<compile_context>
chip_gen: v7x
topology: tpu7x:2x2x1
jax: 0.10.0
libtpu: 0.0.40
codegen_flags: <defaults>
</compile_context>

<pallas_src>
import jax
import jax.numpy as jnp
from jax import lax
from jax.experimental import pallas as pl
from jax.experimental.pallas import tpu as pltpu


def _pick_tile(n, candidates=(512, 256, 128, 64, 32, 16, 8)):
    """Largest MXU-friendly tile that evenly divides n (falls back to n)."""
    for c in candidates:
        if n >= c and n % c == 0:
            return c
    return n


def _self_attention_kernel(xq_ref, xkv_ref, wq_ref, wkv_ref, o_ref,
                           q_scr, m_scr, l_scr, acc_scr):
    # xq_ref : (tq, C_in)   query-tile rows of x
    # xkv_ref: (tk, C_in)   kv-tile rows of x
    # wq_ref : (C_in, Cp)   Wq^T with 1/temperature folded in (zero-padded)
    # wkv_ref: (C_in, 2*Cp) [Wk^T | Wv^T] (zero-padded)
    # o_ref  : (tq, Cp)
    ki = pl.program_id(2)
    cp = o_ref.shape[-1]

    @pl.when(ki == 0)
    def _init():
        # Project the query tile once per (batch, query-tile); scale already
        # folded into wq. Keep q in the compute dtype for the MXU.
        q_scr[...] = jnp.dot(xq_ref[...], wq_ref[...],
                             preferred_element_type=jnp.float32
                             ).astype(q_scr.dtype)
        m_scr[...] = jnp.full_like(m_scr, -jnp.inf)
        l_scr[...] = jnp.zeros_like(l_scr)
        acc_scr[...] = jnp.zeros_like(acc_scr)

    # Fused K/V projection for this KV tile: one MXU pass -> (tk, 2*Cp).
    kv = jnp.dot(xkv_ref[...], wkv_ref[...], preferred_element_type=jnp.float32)
    k = kv[:, :cp].astype(xkv_ref.dtype)
    v = kv[:, cp:].astype(xkv_ref.dtype)

    # scores = q @ k^T without an explicit transpose (contract last dims).
    s = lax.dot_general(q_scr[...], k,
                        dimension_numbers=(((1,), (1,)), ((), ())),
                        preferred_element_type=jnp.float32)       # (tq, tk)

    # Online softmax (unnormalized probabilities; normalize at the end).
    m_prev = m_scr[...]
    m_new = jnp.maximum(m_prev, jnp.max(s, axis=-1, keepdims=True))
    alpha = jnp.exp(m_prev - m_new)
    p = jnp.exp(s - m_new)
    l_scr[...] = alpha * l_scr[...] + jnp.sum(p, axis=-1, keepdims=True)
    acc_scr[...] = alpha * acc_scr[...] + jnp.dot(
        p.astype(v.dtype), v, preferred_element_type=jnp.float32)
    m_scr[...] = m_new

    # TODO(synk): attn_dropout (p=0.1) is a no-op in eval mode; training-mode
    # dropout would need pltpu.prng_seed / prng_random_bits masking of p here.

    @pl.when(ki == pl.num_programs(2) - 1)
    def _finalize():
        o_ref[...] = (acc_scr[...] *
                      pl.reciprocal(l_scr[...], approx=True)).astype(o_ref.dtype)


def self_attention_pallas(x_ncl, wq, wk, wv, *, tile_q=None, tile_kv=None):
    """x_ncl: (B, C_in, N).  wq/wk/wv: (C_out, C_in, 1) Conv1d weights.

    Returns y of shape (B, N, C_out), matching the PyTorch module's output."""
    B, C_in, N = x_ncl.shape
    C_out = wq.shape[0]
    inv_temperature = 1.0 / (float(C_out) ** 0.5)
    dtype = x_ncl.dtype

    # Lane-dense channel padding (multiple of 128).
    Cp = ((C_out + 127) // 128) * 128

    # Weight prep (all tiny one-off host-side ops):
    #  - transpose Conv1d weights to (C_in, C_out)
    #  - fold 1/temperature into Wq
    #  - zero-pad channels to Cp and fuse K/V weights into one matrix.
    wq_t = jnp.transpose(wq[:, :, 0], (1, 0)) * inv_temperature
    wk_t = jnp.transpose(wk[:, :, 0], (1, 0))
    wv_t = jnp.transpose(wv[:, :, 0], (1, 0))
    pad_c = Cp - C_out
    if pad_c:
        zeros = jnp.zeros((C_in, pad_c), dtype=wq_t.dtype)
        wq_t = jnp.concatenate([wq_t, zeros], axis=1)
        wk_t = jnp.concatenate([wk_t, zeros], axis=1)
        wv_t = jnp.concatenate([wv_t, zeros], axis=1)
    wq_t = wq_t.astype(dtype)                                   # (C_in, Cp)
    w_kv = jnp.concatenate([wk_t, wv_t], axis=1).astype(dtype)  # (C_in, 2*Cp)

    # Sequence axis -> sublanes, channels -> lanes.
    x_nlc = jnp.transpose(x_ncl, (0, 2, 1))                     # (B, N, C_in)

    tq = tile_q or _pick_tile(N)
    tk = tile_kv or _pick_tile(N)

    grid_spec = pltpu.PrefetchScalarGridSpec(
        num_scalar_prefetch=0,
        grid=(B, N // tq, N // tk),
        in_specs=[
            pl.BlockSpec((None, tq, C_in), lambda b, qi, ki: (b, qi, 0)),  # x (Q rows)
            pl.BlockSpec((None, tk, C_in), lambda b, qi, ki: (b, ki, 0)),  # x (KV rows)
            pl.BlockSpec((C_in, Cp), lambda b, qi, ki: (0, 0)),            # Wq^T (scaled)
            pl.BlockSpec((C_in, 2 * Cp), lambda b, qi, ki: (0, 0)),        # [Wk^T | Wv^T]
        ],
        out_specs=pl.BlockSpec((None, tq, Cp), lambda b, qi, ki: (b, qi, 0)),
        scratch_shapes=[
            pltpu.VMEM((tq, Cp), dtype),         # projected query tile
            pltpu.VMEM((tq, 1), jnp.float32),    # running max
            pltpu.VMEM((tq, 1), jnp.float32),    # running denominator
            pltpu.VMEM((tq, Cp), jnp.float32),   # output accumulator
        ],
    )

    out_padded = pl.pallas_call(
        _self_attention_kernel,
        out_shape=jax.ShapeDtypeStruct((B, N, Cp), dtype),
        grid_spec=grid_spec,
        compiler_params=pltpu.CompilerParams(
            dimension_semantics=("parallel", "parallel", "arbitrary"),
            vmem_limit_bytes=40 * 1024 * 1024,
        ),
    )(x_nlc, x_nlc, wq_t, w_kv)

    if pad_c:
        return out_padded[:, :, :C_out]
    return out_padded


def self_attention_ref(x_ncl, wq, wk, wv):
    """Pure-JAX reference mirroring the PyTorch forward (eval mode)."""
    C_out = wq.shape[0]
    temperature = float(C_out) ** 0.5
    q = jnp.einsum("oc,bcn->bon", wq[:, :, 0], x_ncl)      # (B, C_out, N)
    k = jnp.einsum("oc,bcn->bon", wk[:, :, 0], x_ncl)
    v = jnp.einsum("oc,bcn->bon", wv[:, :, 0], x_ncl)
    attn = jnp.einsum("bon,bom->bnm", q / temperature, k)  # (B, N, N)
    attn = jax.nn.softmax(attn, axis=-1)
    y = jnp.einsum("bnm,bom->bno", attn, v)                # (B, N, C_out)
    return y


if __name__ == "__main__":
    B, C_in, C_out, N = 2, 4, 4, 16

    key = jax.random.PRNGKey(0)
    kx, kq, kk, kv = jax.random.split(key, 4)

    # Input in PyTorch Conv1d layout (B, C_in, N).
    x = jax.random.normal(kx, (B, C_in, N), dtype=jnp.float32)

    # Conv1d weights (out_channel, in_channel, kernel=1), uniform init like nn.Conv1d.
    bound = 1.0 / (C_in ** 0.5)
    wq = jax.random.uniform(kq, (C_out, C_in, 1), jnp.float32, -bound, bound)
    wk = jax.random.uniform(kk, (C_out, C_in, 1), jnp.float32, -bound, bound)
    wv = jax.random.uniform(kv, (C_out, C_in, 1), jnp.float32, -bound, bound)

    y = self_attention_pallas(x, wq, wk, wv)
    y = jax.block_until_ready(y)

    y_ref = self_attention_ref(x, wq, wk, wv)
    assert y.shape == (B, N, C_out), y.shape
    # Tolerance loosened vs. exact f32: approx EUP reciprocal + online-softmax
    # accumulation order differ slightly from the plain reference.
    assert jnp.allclose(y, y_ref, atol=2e-3, rtol=2e-3), "mismatch vs reference"

    print("KERNEL_OK")
</pallas_src>

<mosaic_0001>
module attributes {stable_mosaic.version = 11 : i64} {
  func.func @_self_attention_kernel(%arg0: i32, %arg1: i32, %arg2: i32, %arg3: memref<1x16x4xf32, #tpu.memory_space<vmem>>, %arg4: memref<1x16x4xf32, #tpu.memory_space<vmem>>, %arg5: memref<4x128xf32, #tpu.memory_space<vmem>>, %arg6: memref<4x256xf32, #tpu.memory_space<vmem>>, %arg7: memref<1x16x128xf32, #tpu.memory_space<vmem>>, %arg8: memref<16x128xf32, #tpu.memory_space<vmem>>, %arg9: memref<16x1xf32, #tpu.memory_space<vmem>>, %arg10: memref<16x1xf32, #tpu.memory_space<vmem>>, %arg11: memref<16x128xf32, #tpu.memory_space<vmem>>) attributes {dimension_semantics = [#tpu.dimension_semantics<parallel>, #tpu.dimension_semantics<parallel>, #tpu.dimension_semantics<arbitrary>], iteration_bounds = array<i64: 2, 1, 1>, scalar_prefetch = 0 : i64, scratch_operands = 4 : i64, tpu.core_type = #tpu.core_type<tc>, window_params = [{transform_indices = @transform_0, window_bounds = array<i64: 1, 16, 4>}, {transform_indices = @transform_1, window_bounds = array<i64: 1, 16, 4>}, {pipeline_mode = #tpu.pipeline_mode<synchronous>, transform_indices = @transform_2, window_bounds = array<i64: 4, 128>}, {pipeline_mode = #tpu.pipeline_mode<synchronous>, transform_indices = @transform_3, window_bounds = array<i64: 4, 256>}, {transform_indices = @transform_4, window_bounds = array<i64: 1, 16, 128>}]} {
    %c0_i32 = arith.constant 0 : i32
    %0 = arith.cmpi eq, %arg2, %c0_i32 : i32
    %1 = arith.extui %0 : i1 to i32
    %c0_i32_0 = arith.constant 0 : i32
    %2 = arith.cmpi ne, %1, %c0_i32_0 : i32
    scf.if %2 {
      %c0_25 = arith.constant 0 : index
      %c0_26 = arith.constant 0 : index
      %c0_27 = arith.constant 0 : index
      %36 = vector.load %arg3[%c0_25, %c0_26, %c0_27] : memref<1x16x4xf32, #tpu.memory_space<vmem>>, vector<1x16x4xf32>
      %37 = vector.shape_cast %36 : vector<1x16x4xf32> to vector<16x4xf32>
      %c0_28 = arith.constant 0 : index
      %c0_29 = arith.constant 0 : index
      %38 = vector.load %arg5[%c0_28, %c0_29] : memref<4x128xf32, #tpu.memory_space<vmem>>, vector<4x128xf32>
      %cst_30 = arith.constant dense<0.000000e+00> : vector<16x128xf32>
      %39 = tpu.matmul %37, %38, %cst_30 {dimension_numbers = #tpu.dot_dimension_numbers<[1], [0], [0], [1], [0, 0, 1, 1], [], []>} : vector<16x4xf32>, vector<4x128xf32>, vector<16x128xf32> -> vector<16x128xf32>
      %c0_31 = arith.constant 0 : index
      %c0_32 = arith.constant 0 : index
      %40 = vector.load %arg8[%c0_31, %c0_32] : memref<16x128xf32, #tpu.memory_space<vmem>>, vector<16x128xf32>
      tpu.vector_store %arg8[%c0_31, %c0_32], %39 {strides = array<i32>} : memref<16x128xf32, #tpu.memory_space<vmem>>, vector<16x128xf32>,
      %cst_33 = arith.constant 0xFF800000 : f32
      %41 = vector.broadcast %cst_33 : f32 to vector<16x1xf32>
      %c0_34 = arith.constant 0 : index
      %c0_35 = arith.constant 0 : index
      %42 = vector.load %arg9[%c0_34, %c0_35] : memref<16x1xf32, #tpu.memory_space<vmem>>, vector<16x1xf32>
      tpu.vector_store %arg9[%c0_34, %c0_35], %41 {strides = array<i32>} : memref<16x1xf32, #tpu.memory_space<vmem>>, vector<16x1xf32>,
      %cst_36 = arith.constant 0.000000e+00 : f32
      %43 = vector.broadcast %cst_36 : f32 to vector<16x1xf32>
      %c0_37 = arith.constant 0 : index
      %c0_38 = arith.constant 0 : index
      %44 = vector.load %arg10[%c0_37, %c0_38] : memref<16x1xf32, #tpu.memory_space<vmem>>, vector<16x1xf32>
      tpu.vector_store %arg10[%c0_37, %c0_38], %43 {strides = array<i32>} : memref<16x1xf32, #tpu.memory_space<vmem>>, vector<16x1xf32>,
      %cst_39 = arith.constant 0.000000e+00 : f32
      %45 = vector.broadcast %cst_39 : f32 to vector<16x128xf32>
      %c0_40 = arith.constant 0 : index
      %c0_41 = arith.constant 0 : index
      %46 = vector.load %arg11[%c0_40, %c0_41] : memref<16x128xf32, #tpu.memory_space<vmem>>, vector<16x128xf32>
      tpu.vector_store %arg11[%c0_40, %c0_41], %45 {strides = array<i32>} : memref<16x128xf32, #tpu.memory_space<vmem>>, vector<16x128xf32>,
    } else {
    }
    %c0 = arith.constant 0 : index
    %c0_1 = arith.constant 0 : index
    %c0_2 = arith.constant 0 : index
    %3 = vector.load %arg4[%c0, %c0_1, %c0_2] : memref<1x16x4xf32, #tpu.memory_space<vmem>>, vector<1x16x4xf32>
    %4 = vector.shape_cast %3 : vector<1x16x4xf32> to vector<16x4xf32>
    %c0_3 = arith.constant 0 : index
    %c0_4 = arith.constant 0 : index
    %5 = vector.load %arg6[%c0_3, %c0_4] : memref<4x256xf32, #tpu.memory_space<vmem>>, vector<4x256xf32>
    %cst = arith.constant dense<0.000000e+00> : vector<16x256xf32>
    %6 = tpu.matmul %4, %5, %cst {dimension_numbers = #tpu.dot_dimension_numbers<[1], [0], [0], [1], [0, 0, 1, 1], [], []>} : vector<16x4xf32>, vector<4x256xf32>, vector<16x256xf32> -> vector<16x256xf32>
    %7 = vector.extract_strided_slice %6 {offsets = [0, 0], sizes = [16, 128], strides = [1, 1]} : vector<16x256xf32> to vector<16x128xf32>
    %8 = vector.extract_strided_slice %6 {offsets = [0, 128], sizes = [16, 128], strides = [1, 1]} : vector<16x256xf32> to vector<16x128xf32>
    %c0_5 = arith.constant 0 : index
    %c0_6 = arith.constant 0 : index
    %9 = vector.load %arg8[%c0_5, %c0_6] : memref<16x128xf32, #tpu.memory_space<vmem>>, vector<16x128xf32>
    %cst_7 = arith.constant dense<0.000000e+00> : vector<16x16xf32>
    %10 = tpu.matmul %9, %7, %cst_7 {dimension_numbers = #tpu.dot_dimension_numbers<[1], [1], [0], [0], [0, 0, 1, 0], [], []>} : vector<16x128xf32>, vector<16x128xf32>, vector<16x16xf32> -> vector<16x16xf32>
    %c0_8 = arith.constant 0 : index
    %c0_9 = arith.constant 0 : index
    %11 = vector.load %arg9[%c0_8, %c0_9] : memref<16x1xf32, #tpu.memory_space<vmem>>, vector<16x1xf32>
    %cst_10 = arith.constant dense<0xFF800000> : vector<16xf32>
    %12 = vector.multi_reduction <maximumf>, %10, %cst_10 [1] : vector<16x16xf32> to vector<16xf32>
    %13 = vector.shape_cast %12 : vector<16xf32> to vector<16x1xf32>
    %14 = arith.maximumf %11, %13 : vector<16x1xf32>
    %15 = arith.subf %11, %14 : vector<16x1xf32>
    %16 = math.exp %15 : vector<16x1xf32>
    %17 = vector.broadcast %14 : vector<16x1xf32> to vector<16x16xf32>
    %18 = arith.subf %10, %17 : vector<16x16xf32>
    %19 = math.exp %18 : vector<16x16xf32>
    %c0_11 = arith.constant 0 : index
    %c0_12 = arith.constant 0 : index
    %20 = vector.load %arg10[%c0_11, %c0_12] : memref<16x1xf32, #tpu.memory_space<vmem>>, vector<16x1xf32>
    %21 = arith.mulf %16, %20 : vector<16x1xf32>
    %cst_13 = arith.constant dense<0.000000e+00> : vector<16xf32>
    %22 = vector.multi_reduction <add>, %19, %cst_13 [1] : vector<16x16xf32> to vector<16xf32>
    %23 = vector.shape_cast %22 : vector<16xf32> to vector<16x1xf32>
    %24 = arith.addf %21, %23 : vector<16x1xf32>
    %c0_14 = arith.constant 0 : index
    %c0_15 = arith.constant 0 : index
    %25 = vector.load %arg10[%c0_14, %c0_15] : memref<16x1xf32, #tpu.memory_space<vmem>>, vector<16x1xf32>
    tpu.vector_store %arg10[%c0_14, %c0_15], %24 {strides = array<i32>} : memref<16x1xf32, #tpu.memory_space<vmem>>, vector<16x1xf32>,
    %c0_16 = arith.constant 0 : index
    %c0_17 = arith.constant 0 : index
    %26 = vector.load %arg11[%c0_16, %c0_17] : memref<16x128xf32, #tpu.memory_space<vmem>>, vector<16x128xf32>
    %27 = vector.broadcast %16 : vector<16x1xf32> to vector<16x128xf32>
    %28 = arith.mulf %27, %26 : vector<16x128xf32>
    %cst_18 = arith.constant dense<0.000000e+00> : vector<16x128xf32>
    %29 = tpu.matmul %19, %8, %cst_18 {dimension_numbers = #tpu.dot_dimension_numbers<[1], [0], [0], [1], [0, 0, 1, 1], [], []>} : vector<16x16xf32>, vector<16x128xf32>, vector<16x128xf32> -> vector<16x128xf32>
    %30 = arith.addf %28, %29 : vector<16x128xf32>
    %c0_19 = arith.constant 0 : index
    %c0_20 = arith.constant 0 : index
    %31 = vector.load %arg11[%c0_19, %c0_20] : memref<16x128xf32, #tpu.memory_space<vmem>>, vector<16x128xf32>
    tpu.vector_store %arg11[%c0_19, %c0_20], %30 {strides = array<i32>} : memref<16x128xf32, #tpu.memory_space<vmem>>, vector<16x128xf32>,
    %c0_21 = arith.constant 0 : index
    %c0_22 = arith.constant 0 : index
    %32 = vector.load %arg9[%c0_21, %c0_22] : memref<16x1xf32, #tpu.memory_space<vmem>>, vector<16x1xf32>
    tpu.vector_store %arg9[%c0_21, %c0_22], %14 {strides = array<i32>} : memref<16x1xf32, #tpu.memory_space<vmem>>, vector<16x1xf32>,
    %c0_i32_23 = arith.constant 0 : i32
    %33 = arith.cmpi eq, %arg2, %c0_i32_23 : i32
    %34 = arith.extui %33 : i1 to i32
    %c0_i32_24 = arith.constant 0 : i32
    %35 = arith.cmpi ne, %34, %c0_i32_24 : i32
    scf.if %35 {
      %c0_25 = arith.constant 0 : index
      %c0_26 = arith.constant 0 : index
      %36 = vector.load %arg11[%c0_25, %c0_26] : memref<16x128xf32, #tpu.memory_space<vmem>>, vector<16x128xf32>
      %c0_27 = arith.constant 0 : index
      %c0_28 = arith.constant 0 : index
      %37 = vector.load %arg10[%c0_27, %c0_28] : memref<16x1xf32, #tpu.memory_space<vmem>>, vector<16x1xf32>
      %38 = tpu.reciprocal %37 {approx = true} : vector<16x1xf32> -> vector<16x1xf32>
      %39 = vector.broadcast %38 : vector<16x1xf32> to vector<16x128xf32>
      %40 = arith.mulf %36, %39 : vector<16x128xf32>
      %c0_29 = arith.constant 0 : index
      %c0_30 = arith.constant 0 : index
      %c0_31 = arith.constant 0 : index
      %41 = vector.load %arg7[%c0_29, %c0_30, %c0_31] : memref<1x16x128xf32, #tpu.memory_space<vmem>>, vector<1x16x128xf32>
      %42 = vector.shape_cast %41 : vector<1x16x128xf32> to vector<16x128xf32>
      %43 = vector.shape_cast %40 : vector<16x128xf32> to vector<1x16x128xf32>
      tpu.vector_store %arg7[%c0_29, %c0_30, %c0_31], %43 {strides = array<i32>} : memref<1x16x128xf32, #tpu.memory_space<vmem>>, vector<1x16x128xf32>,
    } else {
    }
    return
  }
  func.func @transform_0(%arg0: i32, %arg1: i32, %arg2: i32) -> (i32, i32, i32) {
    %c0_i32 = arith.constant 0 : i32
    %c0_i32_0 = arith.constant 0 : i32
    return %arg0, %arg1, %c0_i32 : i32, i32, i32
  }
  func.func @transform_1(%arg0: i32, %arg1: i32, %arg2: i32) -> (i32, i32, i32) {
    %c0_i32 = arith.constant 0 : i32
    %c0_i32_0 = arith.constant 0 : i32
    return %arg0, %arg2, %c0_i32 : i32, i32, i32
  }
  func.func @transform_2(%arg0: i32, %arg1: i32, %arg2: i32) -> (i32, i32) {
    %c0_i32 = arith.constant 0 : i32
    %c0_i32_0 = arith.constant 0 : i32
    %c0_i32_1 = arith.constant 0 : i32
    return %c0_i32, %c0_i32_0 : i32, i32
  }
  func.func @transform_3(%arg0: i32, %arg1: i32, %arg2: i32) -> (i32, i32) {
    %c0_i32 = arith.constant 0 : i32
    %c0_i32_0 = arith.constant 0 : i32
    %c0_i32_1 = arith.constant 0 : i32
    return %c0_i32, %c0_i32_0 : i32, i32
  }
  func.func @transform_4(%arg0: i32, %arg1: i32, %arg2: i32) -> (i32, i32, i32) {
    %c0_i32 = arith.constant 0 : i32
    %c0_i32_0 = arith.constant 0 : i32
    return %arg0, %arg1, %c0_i32 : i32, i32, i32
  }
}

</mosaic_0001>

<llo_original>
// kernel: tpu_custom_call.1
$region0: #{tpu_custom_call.1}
  #allocation0 [shape = 'u32[]', space=smem, size = 0x4, offset = 0x4, fixed_abs, tag = 'smem constant byte address 0x4 - core index']
  #allocation1 [shape = 'u32[144,128]{1,0:T(1,128)}', space=vmem, size = 0x12000, scoped, tag = 'internal scratch']
  #allocation2 [shape = 'f32[16,128]{1,0:T(8,128)}', space=vmem, size = 0x2000, scoped, tag = 'scratch operand']
  #allocation3 [shape = 'f32[16,1]{1,0:T(8,128)}', space=vmem, size = 0x2000, scoped, tag = 'scratch operand']
  #allocation4 [shape = 'f32[16,1]{1,0:T(8,128)}', space=vmem, size = 0x2000, scoped, tag = 'scratch operand']
  #allocation5 [shape = 'f32[16,128]{1,0:T(8,128)}', space=vmem, size = 0x2000, scoped, tag = 'scratch operand']
  %s0 = inlined_call_operand.vmem [shape: f32[2,16,4], index: 0, kind: input, shape index: {}]
  %s1 = inlined_call_operand.vmem [shape: f32[2,16,4], index: 1, kind: input, shape index: {}]
  %s2 = inlined_call_operand.vmem [shape: f32[4,128], index: 2, kind: input, shape index: {}]
  %s3 = inlined_call_operand.vmem [shape: f32[4,256], index: 3, kind: input, shape index: {}]
  %s4 = inlined_call_operand.hbm [shape: f32[2,16,128], index: 4, kind: output, shape index: {}]
  %s5 = sld [smem:[#allocation0]]
  $region57: #{tpu_custom_call.1} parent=0
    _
  %s7 = ssub.s32 1, %s5
  %s8 = scalar_select 0, %s7, %s5
  $region1: #{tpu_custom_call.1} parent=0
    #allocation6 [shape = 'u8[16384]{0}', space=vmem, size = 0x4000, scoped, tag = 'output window, operand 0']
    #allocation7 [shape = 's32[2]{0}', space=sflag, size = 0x8, scoped, tag = 'scoped memory for tpu_custom_call.1']
    %9 = vsyncpa [#allocation7], 0
    %s10 = scalar_lea.sflag [#allocation7], 1
    %11 = vsyncpa %s10, 0
    loop: start=0, step=1, limit=4
    $region2: #{tpu_custom_call.1} parent=1 // loop_pre_header
      _
    $region3: #{tpu_custom_call.1} parent=1 // loop_header
      %s13 = sphi 0, %s17
      %p14 = scmp.ge.s32.totalorder %s13, 4
      %s20 = sphi 0, %s39
      %s21 = sphi 0, %s35
      %s22 = sphi 0, %s31
      %s23 = sphi 0, %s20
      %s24 = sphi 0, %s21
      %s25 = sphi 0, %s22
      %s26 = sphi 0, %s23
      %s27 = sphi 0, %s24
      %s28 = sphi 0, %s25
      %s44 = sphi 0, %s46
      %s47 = sphi 0, %s44
      %s48 = sphi 0, %s47
      %s64 = sphi 0, %s48
      %s72 = sphi 0, %s74
      %s75 = sphi 0, %s72
      %s76 = sphi 0, %s75
      %s92 = sphi 0, %s76
      %s96 = sphi 0, %s96
      %s98 = sphi 0, %s96
      %s99 = sphi 0, %s98
      %s113 = sphi 0, %s99
      %s117 = sphi 0, %s117
      %s119 = sphi 0, %s117
      %s120 = sphi 0, %s119
      %s134 = sphi 0, %s120
      %s142 = sphi 0, %s144
      %s145 = sphi 0, %s142
      %s146 = sphi 0, %s145
      %s162 = sphi 0, %s146
    $region4: #{tpu_custom_call.1} parent=1 // loop_header_branch
      %16 = sbr.rel (%p14) target = $region8
    $region5: #{tpu_custom_call.1} parent=1 // loop_body
      %s18 = ssub.s32 %s13, 1
      %s19 = ssub.s32 %s13, 2
      %s29 = sadd.s32 1, %s22
      %p30 = scmp.ge.s32.totalorder %s29, 1
      %s31 = scalar_select %p30, 0, %s29
      %s32 = sadd.s32 1, %s21
      %s33 = scalar_select %p30, %s32, %s21
      %p34 = scmp.ge.s32.totalorder %s33, 1
      %s35 = scalar_select %p34, 0, %s33
      %s36 = sadd.s32 1, %s20
      %s37 = scalar_select %p34, %s36, %s20
      %p38 = scmp.ge.s32.totalorder %s37, 2
      %s39 = scalar_select %p38, 0, %s37
      %s40 = ssub.s32 %s20, %s39
      %s41 = ssub.s32 %s21, %s35
      %s42 = sor.u32 %s40, %s41
      %p43 = scmp.eq.s32.totalorder %s42, 0
      %s45 = sadd.s32 %s44, 1
      %s46 = scalar_select %p43, %s44, %s45
      %p49 = pneg %p43
      %p50 = scmp.eq.s32.totalorder %s13, 1
      %p51 = por %p49, %p50
      %p52 = scmp.ne.s32.totalorder %s44, %s47
      %p53 = scmp.eq.s32.totalorder %s13, 0
      %p54 = por %p52, %p53
      %p55 = scmp.ne.s32.totalorder %s44, %s47
      %p56 = scmp.eq.s32.totalorder %s18, 1
      %p57 = por %p55, %p56
      %p58 = scmp.ne.s32.totalorder %s47, %s48
      %p59 = scmp.eq.s32.totalorder %s18, 0
      %p60 = por %p58, %p59
      %p61 = scmp.ne.s32.totalorder %s47, %s48
      %p62 = scmp.eq.s32.totalorder %s19, 1
      %p63 = por %p61, %p62
      %p65 = scmp.ne.s32.totalorder %s48, %s64
      %p66 = scmp.eq.s32.totalorder %s19, 0
      %p67 = por %p65, %p66
      %s68 = ssub.s32 %s20, %s39
      %s69 = ssub.s32 %s22, %s31
      %s70 = sor.u32 %s68, %s69
      %p71 = scmp.eq.s32.totalorder %s70, 0
      %s73 = sadd.s32 %s72, 1
      %s74 = scalar_select %p71, %s72, %s73
      %p77 = pneg %p71
      %p78 = scmp.eq.s32.totalorder %s13, 1
      %p79 = por %p77, %p78
      %p80 = scmp.ne.s32.totalorder %s72, %s75
      %p81 = scmp.eq.s32.totalorder %s13, 0
      %p82 = por %p80, %p81
      %p83 = scmp.ne.s32.totalorder %s72, %s75
      %p84 = scmp.eq.s32.totalorder %s18, 1
      %p85 = por %p83, %p84
      %p86 = scmp.ne.s32.totalorder %s75, %s76
      %p87 = scmp.eq.s32.totalorder %s18, 0
      %p88 = por %p86, %p87
      %p89 = scmp.ne.s32.totalorder %s75, %s76
      %p90 = scmp.eq.s32.totalorder %s19, 1
      %p91 = por %p89, %p90
      %p93 = scmp.ne.s32.totalorder %s76, %s92
      %p94 = scmp.eq.s32.totalorder %s19, 0
      %p95 = por %p93, %p94
      %s97 = sadd.s32 %s96, 1
      %p100 = scmp.eq.s32.totalorder %s13, 1
      %p101 = scmp.ne.s32.totalorder %s96, %s98
      %p102 = scmp.eq.s32.totalorder %s13, 0
      %p103 = por %p101, %p102
      %p104 = scmp.ne.s32.totalorder %s96, %s98
      %p105 = scmp.eq.s32.totalorder %s18, 1
      %p106 = por %p104, %p105
      %p107 = scmp.ne.s32.totalorder %s98, %s99
      %p108 = scmp.eq.s32.totalorder %s18, 0
      %p109 = por %p107, %p108
      %p110 = scmp.ne.s32.totalorder %s98, %s99
      %p111 = scmp.eq.s32.totalorder %s19, 1
      %p112 = por %p110, %p111
      %p114 = scmp.ne.s32.totalorder %s99, %s113
      %p115 = scmp.eq.s32.totalorder %s19, 0
      %p116 = por %p114, %p115
      %s118 = sadd.s32 %s117, 1
      %p121 = scmp.eq.s32.totalorder %s13, 1
      %p122 = scmp.ne.s32.totalorder %s117, %s119
      %p123 = scmp.eq.s32.totalorder %s13, 0
      %p124 = por %p122, %p123
      %p125 = scmp.ne.s32.totalorder %s117, %s119
      %p126 = scmp.eq.s32.totalorder %s18, 1
      %p127 = por %p125, %p126
      %p128 = scmp.ne.s32.totalorder %s119, %s120
      %p129 = scmp.eq.s32.totalorder %s18, 0
      %p130 = por %p128, %p129
      %p131 = scmp.ne.s32.totalorder %s119, %s120
      %p132 = scmp.eq.s32.totalorder %s19, 1
      %p133 = por %p131, %p132
      %p135 = scmp.ne.s32.totalorder %s120, %s134
      %p136 = scmp.eq.s32.totalorder %s19, 0
      %p137 = por %p135, %p136
      %s138 = ssub.s32 %s20, %s39
      %s139 = ssub.s32 %s21, %s35
      %s140 = sor.u32 %s138, %s139
      %p141 = scmp.eq.s32.totalorder %s140, 0
      %s143 = sadd.s32 %s142, 1
      %s144 = scalar_select %p141, %s142, %s143
      %p147 = pneg %p141
      %p148 = scmp.eq.s32.totalorder %s13, 1
      %p149 = por %p147, %p148
      %p150 = scmp.ne.s32.totalorder %s142, %s145
      %p151 = scmp.eq.s32.totalorder %s13, 0
      %p152 = por %p150, %p151
      %p153 = scmp.ne.s32.totalorder %s142, %s145
      %p154 = scmp.eq.s32.totalorder %s18, 1
      %p155 = por %p153, %p154
      %p156 = scmp.ne.s32.totalorder %s145, %s146
      %p157 = scmp.eq.s32.totalorder %s18, 0
      %p158 = por %p156, %p157
      %p159 = scmp.ne.s32.totalorder %s145, %s146
      %p160 = scmp.eq.s32.totalorder %s19, 1
      %p161 = por %p159, %p160
      %p163 = scmp.ne.s32.totalorder %s146, %s162
      %p164 = scmp.eq.s32.totalorder %s19, 0
      %p165 = por %p163, %p164
      %p166 = scmp.le.s32.totalorder 1, %s13
      %p167 = scmp.lt.s32.totalorder %s13, 3
      %p168 = pnand %p166, %p167
      %p169 = pneg %p168
      // Predicated region
      $region9: #{tpu_custom_call.1} parent=5 // pred_check
        _
      $region10: #{tpu_custom_call.1} parent=5 // pred_check_branch
        %171 = sbr.rel (%p168) target = $region12
      $region11: #{tpu_custom_call.1} parent=5 // pred_region
        %s172 = ssub.s32 %s13, 1
        // Predicated region
        $region13: #{tpu_custom_call.1} parent=11 // pred_check
          %p173 = pneg %p109
        $region14: #{tpu_custom_call.1} parent=11 // pred_check_branch
          %175 = sbr.rel (%p173) target = $region16
        $region15: #{tpu_custom_call.1} parent=11 // pred_region
          _
        $region16: #{tpu_custom_call.1} parent=11 // pred_fallthru
          _
        // Predicated region
        $region17: #{tpu_custom_call.1} parent=11 // pred_check
          %p176 = pneg %p130
        $region18: #{tpu_custom_call.1} parent=11 // pred_check_branch
          %178 = sbr.rel (%p176) target = $region20
        $region19: #{tpu_custom_call.1} parent=11 // pred_region
          _
        $region20: #{tpu_custom_call.1} parent=11 // pred_fallthru
          _
      $region12: #{tpu_custom_call.1} parent=5 // pred_fallthru
        _
      %p179 = scmp.lt.s32.totalorder %s13, 2
      // Predicated region
      $region21: #{tpu_custom_call.1} parent=5 // pred_check
        %p180 = pneg %p179
      $region22: #{tpu_custom_call.1} parent=5 // pred_check_branch
        %182 = sbr.rel (%p180) target = $region24
      $region23: #{tpu_custom_call.1} parent=5 // pred_region
        // Predicated region
        $region25: #{tpu_custom_call.1} parent=23 // pred_check
          %p183 = pneg %p54
        $region26: #{tpu_custom_call.1} parent=23 // pred_check_branch
          %185 = sbr.rel (%p183) target = $region28
        $region27: #{tpu_custom_call.1} parent=23 // pred_region
          %s186 = smul.u32 2, %s21
          %p187 = scmp.lt.s32.totalorder %s20, 1
          %s188 = scalar_select %p187, %s20, 1
          %p189 = scmp.lt.s32.totalorder %s186, 1
          %s190 = scalar_select %p189, %s186, 1
          %s191 = smul.addr %s188, 2
          %s192 = sadd.s32 %s190, %s191
          %s193 = smul.addr %s192, 8
          %s194 = scalar_lea.vmem %s0, %s193
          %s195 = smul.u32 2, %s21
        $region28: #{tpu_custom_call.1} parent=23 // pred_fallthru
          _
        // Predicated region
        $region29: #{tpu_custom_call.1} parent=23 // pred_check
          %p196 = pneg %p82
        $region30: #{tpu_custom_call.1} parent=23 // pred_check_branch
          %198 = sbr.rel (%p196) target = $region32
        $region31: #{tpu_custom_call.1} parent=23 // pred_region
          %s199 = smul.u32 2, %s22
          %p200 = scmp.lt.s32.totalorder %s20, 1
          %s201 = scalar_select %p200, %s20, 1
          %p202 = scmp.lt.s32.totalorder %s199, 1
          %s203 = scalar_select %p202, %s199, 1
          %s204 = smul.addr %s201, 2
          %s205 = sadd.s32 %s203, %s204
          %s206 = smul.addr %s205, 8
          %s207 = scalar_lea.vmem %s1, %s206
          %s208 = smul.u32 2, %s22
        $region32: #{tpu_custom_call.1} parent=23 // pred_fallthru
          _
      $region24: #{tpu_custom_call.1} parent=5 // pred_fallthru
        _
      %p209 = scmp.le.s32.totalorder 1, %s13
      %p210 = scmp.lt.s32.totalorder %s13, 3
      %p211 = pnand %p209, %p210
      %p212 = pneg %p211
      // Predicated region
      $region33: #{tpu_custom_call.1} parent=5 // pred_check
        _
      $region34: #{tpu_custom_call.1} parent=5 // pred_check_branch
        %214 = sbr.rel (%p211) target = $region36
      $region35: #{tpu_custom_call.1} parent=5 // pred_region
        %s215 = ssub.s32 %s13, 1
        %s216 = smul.u32 2, %s24
        %p217 = scmp.lt.s32.totalorder %s23, 1
        %s218 = scalar_select %p217, %s23, 1
        %p219 = scmp.lt.s32.totalorder %s216, 1
        %s220 = scalar_select %p219, %s216, 1
        %s221 = smul.addr %s218, 2
        %s222 = sadd.s32 %s220, %s221
        %s223 = smul.addr %s222, 8
        %s224 = scalar_lea.vmem %s0, %s223
        %p225 = pneg %p60
        %p226 = pneg %p57
        %s227 = smul.u32 2, %s25
        %p228 = scmp.lt.s32.totalorder %s23, 1
        %s229 = scalar_select %p228, %s23, 1
        %p230 = scmp.lt.s32.totalorder %s227, 1
        %s231 = scalar_select %p230, %s227, 1
        %s232 = smul.addr %s229, 2
        %s233 = sadd.s32 %s231, %s232
        %s234 = smul.addr %s233, 8
        %s235 = scalar_lea.vmem %s1, %s234
        %p236 = pneg %p88
        %p237 = pneg %p85
        %p238 = pneg %p109
        %p239 = pneg %p106
        %p240 = pneg %p130
        %p241 = pneg %p127
        %p242 = pneg %p158
        %p243 = pneg %p155
        %s244 = sand.u32 %s145, 1
        %s245 = scalar_lea.sflag [#allocation7], %s244
        %s246 = sand.u32 %s145, 1
        %s247 = smul.addr %s246, 16
        %s248 = scalar_lea.vmem [#allocation6], %s247
        %s249 = smul.u32 2, %s24
        %p250 = scmp.lt.s32.totalorder %s23, 1
        %s251 = scalar_select %p250, %s23, 1
        %p252 = scmp.lt.s32.totalorder %s249, 1
        %s253 = scalar_select %p252, %s249, 1
        %s254 = smul.addr %s251, 2
        %s255 = sadd.s32 %s253, %s254
        %s256 = smul.addr %s255, 8
        %s257 = scalar_lea.vmem %s0, %s256
        %s258 = smul.u32 2, %s24
        %s259 = smul.u32 2, %s25
        %p260 = scmp.lt.s32.totalorder %s23, 1
        %s261 = scalar_select %p260, %s23, 1
        %p262 = scmp.lt.s32.totalorder %s259, 1
        %s263 = scalar_select %p262, %s259, 1
        %s264 = smul.addr %s261, 2
        %s265 = sadd.s32 %s263, %s264
        %s266 = smul.addr %s265, 8
        %s267 = scalar_lea.vmem %s1, %s266
        %s268 = smul.u32 2, %s25
        %s269 = smul.u32 2, %s24
        %p270 = scmp.eq.s32.totalorder %s25, 0
        // Predicated region
        $region37: #{tpu_custom_call.1} parent=35 // pred_check
          %p271 = pneg %p270
        $region38: #{tpu_custom_call.1} parent=35 // pred_check_branch
          %273 = sbr.rel (%p271) target = $region40
        $region39: #{tpu_custom_call.1} parent=35 // pred_region
          %v274 = vld [vmem:[%s257] sm:$0xff]
          %v275 = vld [vmem:[%s257 + $0x8] sm:$0xff]
          %v276 = vld [vmem:[%s2] sm:$0xf]
          %vm277 = vcmask 31744
          %v279 = vsel %vm277, %v274, 0
          %v282 = vsel %vm277, %v275, 0
          %vm284 = vcmask 1043456
          %v286 = vsel %vm284, %v276, 0
          %288 = vmatprep.subr.mxu0 0.0
          %289 = vmatpush1.msra.mxu0 %v286
          %290 = vmatprep.subr.mxu0 0.0
          %291 = vmatpush1.msra.mxu0 0.0
          %292 = vmatprep.subr.mxu0 0.0
          %293 = vmatpush1.msra.mxu0 0.0
          %294 = vmatprep.subr.mxu0 0.0
          %295 = vmatpush1.msra.mxu0 0.0
          %296 = vmatprep.subr.mxu0 0.0
          %297 = vmatpush1.msra.mxu0 0.0
          %298 = vmatprep.subr.mxu0 0.0
          %299 = vmatpush1.msra.mxu0 0.0
          %300 = vmatprep.subr.mxu0 0.0
          %301 = vmatpush1.msra.mxu0 0.0
          %302 = vmatprep.subr.mxu0 0.0
          %303 = vmatpush1.msra.mxu0 0.0
          %304 = vmatprep.subr.mxu0 0.0
          %305 = vmatpush1.msra.mxu0 0.0
          %306 = vmatprep.subr.mxu0 0.0
          %307 = vmatpush1.msra.mxu0 0.0
          %308 = vmatprep.subr.mxu0 0.0
          %309 = vmatpush1.msra.mxu0 0.0
          %310 = vmatprep.subr.mxu0 0.0
          %311 = vmatpush1.msra.mxu0 0.0
          %312 = vmatprep.subr.mxu0 0.0
          %313 = vmatpush1.msra.mxu0 0.0
          %314 = vmatprep.subr.mxu0 0.0
          %315 = vmatpush1.msra.mxu0 0.0
          %316 = vmatprep.subr.mxu0 0.0
          %317 = vmatpush1.msra.mxu0 0.0
          %318 = vmatprep.subr.mxu0 0.0
          %319 = vmatpush1.msra.mxu0 0.0
          %320 = vmatprep.subr.mxu0 0.0
          %321 = vmatpush1.msra.mxu0 0.0
          %322 = vmatprep.subr.mxu0 0.0
          %323 = vmatpush1.msra.mxu0 0.0
          %324 = vmatprep.subr.mxu0 0.0
          %325 = vmatpush1.msra.mxu0 0.0
          %326 = vmatprep.subr.mxu0 0.0
          %327 = vmatpush1.msra.mxu0 0.0
          %328 = vmatprep.subr.mxu0 0.0
          %329 = vmatpush1.msra.mxu0 0.0
          %330 = vmatprep.subr.mxu0 0.0
          %331 = vmatpush1.msra.mxu0 0.0
          %332 = vmatprep.subr.mxu0 0.0
          %333 = vmatpush1.msra.mxu0 0.0
          %334 = vmatprep.subr.mxu0 0.0
          %335 = vmatpush1.msra.mxu0 0.0
          %336 = vmatprep.subr.mxu0 0.0
          %337 = vmatpush1.msra.mxu0 0.0
          %338 = vmatprep.subr.mxu0 0.0
          %339 = vmatpush1.msra.mxu0 0.0
          %340 = vmatprep.subr.mxu0 0.0
          %341 = vmatpush1.msra.mxu0 0.0
          %342 = vmatprep.subr.mxu0 0.0
          %343 = vmatpush1.msra.mxu0 0.0
          %344 = vmatprep.subr.mxu0 0.0
          %345 = vmatpush1.msra.mxu0 0.0
          %346 = vmatprep.subr.mxu0 0.0
          %347 = vmatpush1.msra.mxu0 0.0
          %348 = vmatprep.subr.mxu0 0.0
          %349 = vmatpush1.msra.mxu0 0.0
          %350 = vmatprep.subr.mxu0 0.0
          %351 = vmatpush1.msra.mxu0 0.0
          %352 = vmatprep.mubr.f32.mxu0 0.0
          %353 = vmatmul.mubr.f32.gmra.mrb[0].mxu0 %v279
          %v354 = vpop.f32.mrb[0].mxu0
          %v355 = vadd.f32 0.0, %v354
          %v356 = vpop.f32.mrb[0].mxu0
          %357 = vmatprep.mubr.f32.mxu0 0.0
          %358 = vmatmul.mubr.f32.gmra.mrb[0].mxu0 %v282
          %v359 = vpop.f32.mrb[0].mxu0
          %v360 = vadd.f32 0.0, %v359
          %v361 = vpop.f32.mrb[0].mxu0
          %362 = vdwg.mxu0
          %363 = vst [vmem:[#allocation2] sm:$0xff] %v355
          %364 = vst [vmem:[#allocation2 + $0x8] sm:$0xff] %v360
          %vm365 = vcmask 7168
          %366 = vst.msk [vmem:[#allocation3] sm:$0xff] %vm365, -inf
          %367 = vst.msk [vmem:[#allocation3 + $0x8] sm:$0xff] %vm365, -inf
          %368 = vst.msk [vmem:[#allocation4] sm:$0xff] %vm365, 0.0
          %369 = vst.msk [vmem:[#allocation4 + $0x8] sm:$0xff] %vm365, 0.0
          %370 = vst [vmem:[#allocation5] sm:$0xff] 0.0
          %371 = vst [vmem:[#allocation5 + $0x8] sm:$0xff] 0.0
        $region40: #{tpu_custom_call.1} parent=35 // pred_fallthru
          _
        %v372 = vld [vmem:[%s267] sm:$0xff]
        %v373 = vld [vmem:[%s267 + $0x8] sm:$0xff]
        %v374 = vld [vmem:[%s3] sm:$0xff]
        %v376 = vcombine.high %v374, %v374
        %vm377 = vcmask 31744
        %v379 = vsel %vm377, %v372, 0
        %v382 = vsel %vm377, %v373, 0
        %vm384 = vcmask 1043456
        %v385 = vsel %vm384, %v374, 0
        %v387 = vsel %vm384, %v376, 0
        %389 = vmatprep.subr.mxu0 %v387
        %390 = vmatpush1.msra.mxu0 %v385
        %391 = vmatprep.subr.mxu0 0.0
        %392 = vmatpush1.msra.mxu0 0.0
        %393 = vmatprep.subr.mxu0 0.0
        %394 = vmatpush1.msra.mxu0 0.0
        %395 = vmatprep.subr.mxu0 0.0
        %396 = vmatpush1.msra.mxu0 0.0
        %397 = vmatprep.subr.mxu0 0.0
        %398 = vmatpush1.msra.mxu0 0.0
        %399 = vmatprep.subr.mxu0 0.0
        %400 = vmatpush1.msra.mxu0 0.0
        %401 = vmatprep.subr.mxu0 0.0
        %402 = vmatpush1.msra.mxu0 0.0
        %403 = vmatprep.subr.mxu0 0.0
        %404 = vmatpush1.msra.mxu0 0.0
        %405 = vmatprep.subr.mxu0 0.0
        %406 = vmatpush1.msra.mxu0 0.0
        %407 = vmatprep.subr.mxu0 0.0
        %408 = vmatpush1.msra.mxu0 0.0
        %409 = vmatprep.subr.mxu0 0.0
        %410 = vmatpush1.msra.mxu0 0.0
        %411 = vmatprep.subr.mxu0 0.0
        %412 = vmatpush1.msra.mxu0 0.0
        %413 = vmatprep.subr.mxu0 0.0
        %414 = vmatpush1.msra.mxu0 0.0
        %415 = vmatprep.subr.mxu0 0.0
        %416 = vmatpush1.msra.mxu0 0.0
        %417 = vmatprep.subr.mxu0 0.0
        %418 = vmatpush1.msra.mxu0 0.0
        %419 = vmatprep.subr.mxu0 0.0
        %420 = vmatpush1.msra.mxu0 0.0
        %421 = vmatprep.subr.mxu0 0.0
        %422 = vmatpush1.msra.mxu0 0.0
        %423 = vmatprep.subr.mxu0 0.0
        %424 = vmatpush1.msra.mxu0 0.0
        %425 = vmatprep.subr.mxu0 0.0
        %426 = vmatpush1.msra.mxu0 0.0
        %427 = vmatprep.subr.mxu0 0.0
        %428 = vmatpush1.msra.mxu0 0.0
        %429 = vmatprep.subr.mxu0 0.0
        %430 = vmatpush1.msra.mxu0 0.0
        %431 = vmatprep.subr.mxu0 0.0
        %432 = vmatpush1.msra.mxu0 0.0
        %433 = vmatprep.subr.mxu0 0.0
        %434 = vmatpush1.msra.mxu0 0.0
        %435 = vmatprep.subr.mxu0 0.0
        %436 = vmatpush1.msra.mxu0 0.0
        %437 = vmatprep.subr.mxu0 0.0
        %438 = vmatpush1.msra.mxu0 0.0
        %439 = vmatprep.subr.mxu0 0.0
        %440 = vmatpush1.msra.mxu0 0.0
        %441 = vmatprep.subr.mxu0 0.0
        %442 = vmatpush1.msra.mxu0 0.0
        %443 = vmatprep.subr.mxu0 0.0
        %444 = vmatpush1.msra.mxu0 0.0
        %445 = vmatprep.subr.mxu0 0.0
        %446 = vmatpush1.msra.mxu0 0.0
        %447 = vmatprep.subr.mxu0 0.0
        %448 = vmatpush1.msra.mxu0 0.0
        %449 = vmatprep.subr.mxu0 0.0
        %450 = vmatpush1.msra.mxu0 0.0
        %451 = vmatprep.subr.mxu0 0.0
        %452 = vmatpush1.msra.mxu0 0.0
        %453 = vmatprep.mubr.f32.mxu0 0.0
        %454 = vmatmul.mubr.f32.gmra.mrb[0].mxu0 %v379
        %v455 = vpop.f32.mrb[0].mxu0
        %v456 = vadd.f32 0.0, %v455
        %v457 = vpop.f32.mrb[0].mxu0
        %v458 = vadd.f32 0.0, %v457
        %459 = vmatprep.mubr.f32.mxu0 0.0
        %460 = vmatmul.mubr.f32.gmra.mrb[0].mxu0 %v382
        %v461 = vpop.f32.mrb[0].mxu0
        %v462 = vadd.f32 0.0, %v461
        %v463 = vpop.f32.mrb[0].mxu0
        %v464 = vadd.f32 0.0, %v463
        %465 = vdwg.mxu0
        %v466 = vld [vmem:[#allocation2] sm:$0xff]
        %v467 = vld [vmem:[#allocation2 + $0x8] sm:$0xff]
        %468 = vmatprep.subr.mxu0 0.0
        %469 = vmatpush1.xpose.msra.mxu0 %v456
        %470 = vmatprep.subr.mxu0 0.0
        %471 = vmatpush1.xpose.msra.mxu0 %v462
        %472 = vmatprep.subr.mxu0 0.0
        %473 = vmatpush1.xpose.msra.mxu0 0.0
        %474 = vmatprep.subr.mxu0 0.0
        %475 = vmatpush1.xpose.msra.mxu0 0.0
        %476 = vmatprep.subr.mxu0 0.0
        %477 = vmatpush1.xpose.msra.mxu0 0.0
        %478 = vmatprep.subr.mxu0 0.0
        %479 = vmatpush1.xpose.msra.mxu0 0.0
        %480 = vmatprep.subr.mxu0 0.0
        %481 = vmatpush1.xpose.msra.mxu0 0.0
        %482 = vmatprep.subr.mxu0 0.0
        %483 = vmatpush1.xpose.msra.mxu0 0.0
        %484 = vmatprep.subr.mxu0 0.0
        %485 = vmatpush1.xpose.msra.mxu0 0.0
        %486 = vmatprep.subr.mxu0 0.0
        %487 = vmatpush1.xpose.msra.mxu0 0.0
        %488 = vmatprep.subr.mxu0 0.0
        %489 = vmatpush1.xpose.msra.mxu0 0.0
        %490 = vmatprep.subr.mxu0 0.0
        %491 = vmatpush1.xpose.msra.mxu0 0.0
        %492 = vmatprep.subr.mxu0 0.0
        %493 = vmatpush1.xpose.msra.mxu0 0.0
        %494 = vmatprep.subr.mxu0 0.0
        %495 = vmatpush1.xpose.msra.mxu0 0.0
        %496 = vmatprep.subr.mxu0 0.0
        %497 = vmatpush1.xpose.msra.mxu0 0.0
        %498 = vmatprep.subr.mxu0 0.0
        %499 = vmatpush1.xpose.msra.mxu0 0.0
        %500 = vmatprep.subr.mxu0 0.0
        %501 = vmatpush1.xpose.msra.mxu0 0.0
        %502 = vmatprep.subr.mxu0 0.0
        %503 = vmatpush1.xpose.msra.mxu0 0.0
        %504 = vmatprep.subr.mxu0 0.0
        %505 = vmatpush1.xpose.msra.mxu0 0.0
        %506 = vmatprep.subr.mxu0 0.0
        %507 = vmatpush1.xpose.msra.mxu0 0.0
        %508 = vmatprep.subr.mxu0 0.0
        %509 = vmatpush1.xpose.msra.mxu0 0.0
        %510 = vmatprep.subr.mxu0 0.0
        %511 = vmatpush1.xpose.msra.mxu0 0.0
        %512 = vmatprep.subr.mxu0 0.0
        %513 = vmatpush1.xpose.msra.mxu0 0.0
        %514 = vmatprep.subr.mxu0 0.0
        %515 = vmatpush1.xpose.msra.mxu0 0.0
        %516 = vmatprep.subr.mxu0 0.0
        %517 = vmatpush1.xpose.msra.mxu0 0.0
        %518 = vmatprep.subr.mxu0 0.0
        %519 = vmatpush1.xpose.msra.mxu0 0.0
        %520 = vmatprep.subr.mxu0 0.0
        %521 = vmatpush1.xpose.msra.mxu0 0.0
        %522 = vmatprep.subr.mxu0 0.0
        %523 = vmatpush1.xpose.msra.mxu0 0.0
        %524 = vmatprep.subr.mxu0 0.0
        %525 = vmatpush1.xpose.msra.mxu0 0.0
        %526 = vmatprep.subr.mxu0 0.0
        %527 = vmatpush1.xpose.msra.mxu0 0.0
        %528 = vmatprep.subr.mxu0 0.0
        %529 = vmatpush1.xpose.msra.mxu0 0.0
        %530 = vmatprep.subr.mxu0 0.0
        %531 = vmatpush1.xpose.msra.mxu0 0.0
        %532 = vmatprep.mubr.f32.mxu0 0.0
        %533 = vmatmul.mubr.f32.gmra.mrb[0].mxu0 %v466
        %v534 = vpop.f32.mrb[0].mxu0
        %v535 = vadd.f32 0.0, %v534
        %v536 = vpop.f32.mrb[0].mxu0
        %537 = vmatprep.mubr.f32.mxu0 0.0
        %538 = vmatmul.mubr.f32.gmra.mrb[0].mxu0 %v467
        %v539 = vpop.f32.mrb[0].mxu0
        %v540 = vadd.f32 0.0, %v539
        %v541 = vpop.f32.mrb[0].mxu0
        %542 = vdwg.mxu0
        %v543 = vld [vmem:[#allocation3] sm:$0xff]
        %v544 = vld [vmem:[#allocation3 + $0x8] sm:$0xff]
        %vm545 = vcmask 130048
        %v546 = vsel %vm545, %v535, -inf
        %547 = vmax.xlane.f32.xlu0 %v546
        %v548 = vpop.xlane.xlu0 %547
        %v549 = vsel %vm545, %v540, -inf
        %550 = vmax.xlane.f32.xlu0 %v549
        %v551 = vpop.xlane.xlu0 %550
        %v552 = vmax.f32 %v543, %v548
        %v553 = vmax.f32 %v544, %v551
        %v554 = vsub.f32 %v543, %v552
        %v555 = vsub.f32 %v544, %v553
        %v556 = vmul.f32 %v554, 1.442695
        %v557 = vpow.pop %v556
        %v558 = vmul.f32 %v555, 1.442695
        %v559 = vpow.pop %v558
        %561 = vset.pattern.permute.xlu0 0
        %562 = vperm.xlu0 %561, %v552
        %v563 = vpop.permute.xlu0 %562
        %566 = vset.pattern.permute.xlu0 0
        %567 = vperm.xlu0 %566, %v553
        %v568 = vpop.permute.xlu0 %567
        %v570 = vsub.f32 %v535, %v563
        %v571 = vsub.f32 %v540, %v568
        %v572 = vmul.f32 %v570, 1.442695
        %v573 = vpow.pop %v572
        %v574 = vmul.f32 %v571, 1.442695
        %v575 = vpow.pop %v574
        %v576 = vld [vmem:[#allocation4] sm:$0xff]
        %v577 = vld [vmem:[#allocation4 + $0x8] sm:$0xff]
        %v578 = vmul.f32 %v557, %v576
        %v579 = vmul.f32 %v559, %v577
        %v580 = vsel %vm545, %v573, 0.0
        %581 = vadd.xlane.f32.xlu0 %v580
        %v582 = vpop.xlane.xlu0 %581
        %v583 = vsel %vm545, %v575, 0.0
        %584 = vadd.xlane.f32.xlu0 %v583
        %v585 = vpop.xlane.xlu0 %584
        %v586 = vadd.f32 %v578, %v582
        %v587 = vadd.f32 %v579, %v585
        %vm588 = vcmask 7168
        %589 = vst.msk [vmem:[#allocation4] sm:$0xff] %vm588, %v586
        %590 = vst.msk [vmem:[#allocation4 + $0x8] sm:$0xff] %vm588, %v587
        %v591 = vld [vmem:[#allocation5] sm:$0xff]
        %v592 = vld [vmem:[#allocation5 + $0x8] sm:$0xff]
        %594 = vset.pattern.permute.xlu0 0
        %595 = vperm.xlu0 %594, %v557
        %v596 = vpop.permute.xlu0 %595
        %599 = vset.pattern.permute.xlu0 0
        %600 = vperm.xlu0 %599, %v559
        %v601 = vpop.permute.xlu0 %600
        %v603 = vmul.f32 %v596, %v591
        %v604 = vmul.f32 %v601, %v592
        %v606 = vsel %vm545, %v573, 0
        %v609 = vsel %vm545, %v575, 0
        %611 = vmatprep.subr.mxu0 0.0
        %612 = vmatpush1.msra.mxu0 %v458
        %613 = vmatprep.subr.mxu0 0.0
        %614 = vmatpush1.msra.mxu0 %v464
        %615 = vmatprep.subr.mxu0 0.0
        %616 = vmatpush1.msra.mxu0 0.0
        %617 = vmatprep.subr.mxu0 0.0
        %618 = vmatpush1.msra.mxu0 0.0
        %619 = vmatprep.subr.mxu0 0.0
        %620 = vmatpush1.msra.mxu0 0.0
        %621 = vmatprep.subr.mxu0 0.0
        %622 = vmatpush1.msra.mxu0 0.0
        %623 = vmatprep.subr.mxu0 0.0
        %624 = vmatpush1.msra.mxu0 0.0
        %625 = vmatprep.subr.mxu0 0.0
        %626 = vmatpush1.msra.mxu0 0.0
        %627 = vmatprep.subr.mxu0 0.0
        %628 = vmatpush1.msra.mxu0 0.0
        %629 = vmatprep.subr.mxu0 0.0
        %630 = vmatpush1.msra.mxu0 0.0
        %631 = vmatprep.subr.mxu0 0.0
        %632 = vmatpush1.msra.mxu0 0.0
        %633 = vmatprep.subr.mxu0 0.0
        %634 = vmatpush1.msra.mxu0 0.0
        %635 = vmatprep.subr.mxu0 0.0
        %636 = vmatpush1.msra.mxu0 0.0
        %637 = vmatprep.subr.mxu0 0.0
        %638 = vmatpush1.msra.mxu0 0.0
        %639 = vmatprep.subr.mxu0 0.0
        %640 = vmatpush1.msra.mxu0 0.0
        %641 = vmatprep.subr.mxu0 0.0
        %642 = vmatpush1.msra.mxu0 0.0
        %643 = vmatprep.subr.mxu0 0.0
        %644 = vmatpush1.msra.mxu0 0.0
        %645 = vmatprep.subr.mxu0 0.0
        %646 = vmatpush1.msra.mxu0 0.0
        %647 = vmatprep.subr.mxu0 0.0
        %648 = vmatpush1.msra.mxu0 0.0
        %649 = vmatprep.subr.mxu0 0.0
        %650 = vmatpush1.msra.mxu0 0.0
        %651 = vmatprep.subr.mxu0 0.0
        %652 = vmatpush1.msra.mxu0 0.0
        %653 = vmatprep.subr.mxu0 0.0
        %654 = vmatpush1.msra.mxu0 0.0
        %655 = vmatprep.subr.mxu0 0.0
        %656 = vmatpush1.msra.mxu0 0.0
        %657 = vmatprep.subr.mxu0 0.0
        %658 = vmatpush1.msra.mxu0 0.0
        %659 = vmatprep.subr.mxu0 0.0
        %660 = vmatpush1.msra.mxu0 0.0
        %661 = vmatprep.subr.mxu0 0.0
        %662 = vmatpush1.msra.mxu0 0.0
        %663 = vmatprep.subr.mxu0 0.0
        %664 = vmatpush1.msra.mxu0 0.0
        %665 = vmatprep.subr.mxu0 0.0
        %666 = vmatpush1.msra.mxu0 0.0
        %667 = vmatprep.subr.mxu0 0.0
        %668 = vmatpush1.msra.mxu0 0.0
        %669 = vmatprep.subr.mxu0 0.0
        %670 = vmatpush1.msra.mxu0 0.0
        %671 = vmatprep.subr.mxu0 0.0
        %672 = vmatpush1.msra.mxu0 0.0
        %673 = vmatprep.subr.mxu0 0.0
        %674 = vmatpush1.msra.mxu0 0.0
        %675 = vmatprep.mubr.f32.mxu0 0.0
        %676 = vmatmul.mubr.f32.gmra.mrb[0].mxu0 %v606
        %v677 = vpop.f32.mrb[0].mxu0
        %v678 = vadd.f32 0.0, %v677
        %v679 = vpop.f32.mrb[0].mxu0
        %680 = vmatprep.mubr.f32.mxu0 0.0
        %681 = vmatmul.mubr.f32.gmra.mrb[0].mxu0 %v609
        %v682 = vpop.f32.mrb[0].mxu0
        %v683 = vadd.f32 0.0, %v682
        %v684 = vpop.f32.mrb[0].mxu0
        %685 = vdwg.mxu0
        %v686 = vadd.f32 %v603, %v678
        %v687 = vadd.f32 %v604, %v683
        %688 = vst [vmem:[#allocation5] sm:$0xff] %v686
        %689 = vst [vmem:[#allocation5 + $0x8] sm:$0xff] %v687
        %690 = vst.msk [vmem:[#allocation3] sm:$0xff] %vm588, %v552
        %691 = vst.msk [vmem:[#allocation3 + $0x8] sm:$0xff] %vm588, %v553
        // Predicated region
        $region41: #{tpu_custom_call.1} parent=35 // pred_check
          %p692 = pneg %p270
        $region42: #{tpu_custom_call.1} parent=35 // pred_check_branch
          %694 = sbr.rel (%p692) target = $region44
        $region43: #{tpu_custom_call.1} parent=35 // pred_region
          %v695 = vld [vmem:[#allocation5] sm:$0xff]
          %v696 = vld [vmem:[#allocation5 + $0x8] sm:$0xff]
          %v697 = vld [vmem:[#allocation4] sm:$0xff]
          %v698 = vld [vmem:[#allocation4 + $0x8] sm:$0xff]
          %v699 = vrcp.pop %v697
          %v700 = vrcp.pop %v698
          %702 = vset.pattern.permute.xlu0 0
          %703 = vperm.xlu0 %702, %v699
          %v704 = vpop.permute.xlu0 %703
          %707 = vset.pattern.permute.xlu0 0
          %708 = vperm.xlu0 %707, %v700
          %v709 = vpop.permute.xlu0 %708
          %v711 = vmul.f32 %v695, %v704
          %v712 = vmul.f32 %v696, %v709
          %713 = vst [vmem:[%s248] sm:$0xff] %v711
          %714 = vst [vmem:[%s248 + $0x8] sm:$0xff] %v712
        $region44: #{tpu_custom_call.1} parent=35 // pred_fallthru
          _
        %s715 = sand.u32 %s145, 1
        %s716 = scalar_lea.sflag [#allocation7], %s715
        %s717 = sand.u32 %s145, 1
        %s718 = smul.addr %s717, 16
        %s719 = scalar_lea.vmem [#allocation6], %s718
        // Predicated region
        $region45: #{tpu_custom_call.1} parent=35 // pred_check
          %p720 = pneg %p155
        $region46: #{tpu_custom_call.1} parent=35 // pred_check_branch
          %722 = sbr.rel (%p720) target = $region48
        $region47: #{tpu_custom_call.1} parent=35 // pred_region
          %s723 = smul.u32 2, %s24
          %s725 = ssub.s32 256, 256
          %726 = vsyncadd %s716, %s725
          %s727 = smul.addr %s23, 2
          %s728 = sadd.s32 %s723, %s727
          %s729 = smul.addr %s728, 128
          %s730 = scalar_lea.hbm %s4, %s729
          %s731 = sshll.u32 %s719, 4
          %s732 = int_to_ptr.vmem [resolvable:$true] %s731
          %737 = dma.vmem_to_hbm [thread:$0]  %s732, 256, %s730, %s716, 128, 128, 8
        $region48: #{tpu_custom_call.1} parent=35 // pred_fallthru
          _
      $region36: #{tpu_custom_call.1} parent=5 // pred_fallthru
        _
      %p738 = scmp.le.s32.totalorder 2, %s13
      // Predicated region
      $region49: #{tpu_custom_call.1} parent=5 // pred_check
        %p739 = pneg %p738
      $region50: #{tpu_custom_call.1} parent=5 // pred_check_branch
        %741 = sbr.rel (%p739) target = $region52
      $region51: #{tpu_custom_call.1} parent=5 // pred_region
        %s742 = ssub.s32 %s13, 2
        // Predicated region
        $region53: #{tpu_custom_call.1} parent=51 // pred_check
          %p743 = pneg %p161
        $region54: #{tpu_custom_call.1} parent=51 // pred_check_branch
          %745 = sbr.rel (%p743) target = $region56
        $region55: #{tpu_custom_call.1} parent=51 // pred_region
          %s746 = sand.u32 %s146, 1
          %s747 = scalar_lea.sflag [#allocation7], %s746
          %s748 = sand.u32 %s146, 1
          %s749 = smul.addr %s748, 16
          %s750 = scalar_lea.vmem [#allocation6], %s749
          %751 = dma.done %s747, 256
        $region56: #{tpu_custom_call.1} parent=51 // pred_fallthru
          _
      $region52: #{tpu_custom_call.1} parent=5 // pred_fallthru
        _
    $region6: #{tpu_custom_call.1} parent=1 // loop_footer
      %s17 = sadd.s32 1, %s13
    $region7: #{tpu_custom_call.1} parent=1 // loop_footer_branch
      %12 = sbr.rel target = $region3
    $region8: #{tpu_custom_call.1} parent=1 // loop_exit
      _
    %752 = vsyncpa [#allocation7], 1
    %s753 = scalar_lea.sflag [#allocation7], 1
    %754 = vsyncpa %s753, 1

</llo_original>
